<compile_context>
chip_gen: v5e
topology: v5e:2x2
jax: 0.10.0
libtpu: 0.0.40
codegen_flags: <defaults>
</compile_context>

<pallas_src>
import jax
import jax.numpy as jnp
from jax.experimental import pallas as pl
from jax.experimental.pallas import tpu as pltpu


# --------------------------------------------------------------------------- #
# Kernels
# --------------------------------------------------------------------------- #
def _glu_ffn_fused_kernel(x_ref, w12_ref, b12_ref, w2_ref, b2_ref, o_ref):
    """Single hidden tile: whole FFN for one row tile, no accumulator needed."""
    hidden = w2_ref.shape[0]
    dn = (((1,), (0,)), ((), ()))                 # contract x.last with W.first

    x = x_ref[...]                                # (tm, dim), bf16/native
    # Fused fc1+gate projection: one MXU pass over a (dim, 2*hidden) RHS.
    proj = jax.lax.dot_general(x, w12_ref[...], dn,
                               preferred_element_type=jnp.float32)
    proj = proj + b12_ref[...]                    # (tm, 2*hidden) f32
    fc1 = proj[:, :hidden]
    gate = proj[:, hidden:]

    # GLU gating in f32 (sigmoid -> EUP, multiply -> VPU).
    gated = jax.nn.sigmoid(gate) * fc1
    # TODO(synk): training-mode dropout (p=0.1) omitted — eval-mode identity.

    out = jax.lax.dot_general(gated.astype(w2_ref.dtype), w2_ref[...], dn,
                              preferred_element_type=jnp.float32)
    o_ref[...] = (out + b2_ref[...]).astype(o_ref.dtype)


def _glu_ffn_tiled_kernel(x_ref, w1_ref, b1_ref, wg_ref, bg_ref, w2_ref, b2_ref,
                          o_ref, acc_ref):
    """Hidden dimension tiled (last grid axis, 'arbitrary'); f32 accumulator."""
    h = pl.program_id(1)
    dn = (((1,), (0,)), ((), ()))

    x = x_ref[...]
    fc1 = jax.lax.dot_general(x, w1_ref[...], dn,
                              preferred_element_type=jnp.float32) + b1_ref[...]
    gate = jax.lax.dot_general(x, wg_ref[...], dn,
                               preferred_element_type=jnp.float32) + bg_ref[...]
    gated = jax.nn.sigmoid(gate) * fc1
    # TODO(synk): training-mode dropout (p=0.1) omitted — eval-mode identity.

    partial = jax.lax.dot_general(gated.astype(w2_ref.dtype), w2_ref[...], dn,
                                  preferred_element_type=jnp.float32)

    @pl.when(h == 0)
    def _():                                       # init with first partial
        acc_ref[...] = partial

    @pl.when(h > 0)
    def _():
        acc_ref[...] += partial

    @pl.when(h == pl.num_programs(1) - 1)
    def _():
        o_ref[...] = (acc_ref[...] + b2_ref[...]).astype(o_ref.dtype)


# --------------------------------------------------------------------------- #
# Parameter preparation (do ONCE at load time, not per forward call)
# --------------------------------------------------------------------------- #
def prepare_glu_ffn_params(w1, b1, wg, bg, w2, b2, compute_dtype=jnp.bfloat16):
    """PyTorch nn.Linear layouts in: w1, wg: (hidden, dim); w2: (dim, hidden).
    Returns pre-transposed, MXU-dtype weights + f32 biases."""
    hidden, dim = w1.shape
    # fc1 columns first, gate columns second -> single fused RHS.
    w12_t = jnp.concatenate([w1.T, wg.T], axis=1).astype(compute_dtype)  # (dim, 2H)
    b12 = jnp.concatenate([b1, bg]).reshape(1, 2 * hidden).astype(jnp.float32)
    w2_t = w2.T.astype(compute_dtype)                                    # (H, dim)
    b2_r = b2.reshape(1, dim).astype(jnp.float32)
    return (w12_t, b12, w2_t, b2_r)


# --------------------------------------------------------------------------- #
# Tile selection / VMEM budgeting
# --------------------------------------------------------------------------- #
def _tpu_vmem_capacity_bytes():
    try:
        cap = int(pltpu.get_tpu_info().vmem_capacity_bytes)
        if cap > 0:
            return cap
    except Exception:
        pass
    return 64 << 20  # conservative fallback: v7x per-TC VMEM


def _fused_vmem_bytes(tm, dim, hidden, in_bpe, out_bpe):
    per_block = (tm * dim * in_bpe            # x tile
                 + dim * 2 * hidden * in_bpe  # fused W12
                 + 2 * hidden * 4             # fused bias (f32)
                 + hidden * dim * in_bpe      # W2
                 + dim * 4                    # b2 (f32)
                 + tm * dim * out_bpe)        # out tile
    temps = (tm * 2 * hidden + tm * hidden + tm * dim) * 4  # proj, gated, out f32
    return 2 * per_block + temps               # 2x: double buffering


def _tiled_vmem_bytes(tm, th, dim, hidden, in_bpe, out_bpe):
    per_block = (tm * dim * in_bpe
                 + 2 * dim * th * in_bpe      # w1 + wg tiles
                 + 2 * th * 4
                 + th * dim * in_bpe          # w2 tile
                 + dim * 4
                 + tm * dim * out_bpe)
    temps = (3 * tm * th + tm * dim) * 4       # fc1, gate, gated, partial (f32)
    acc = tm * dim * 4
    return 2 * per_block + acc + temps


def _choose_tiles(M8, dim, hidden, in_bpe, out_bpe, budget):
    """Return (tm, th). th == hidden means the fused single-hidden-tile path."""
    # Preferred: whole hidden resident -> weights DMA'd once for the kernel.
    for cand in (512, 256, 128, 64, 32, 16, 8):
        tm_c = min(cand, M8)
        if _fused_vmem_bytes(tm_c, dim, hidden, in_bpe, out_bpe) <= budget:
            return tm_c, hidden

    # Fallback: tile hidden. Prioritize large row tiles (amortize weight
    # re-streaming), then large hidden tiles. th must be a multiple of 128.
    th_cands = [d for d in range(hidden, 0, -1)
                if d < hidden and d % 128 == 0 and hidden % d == 0]
    if not th_cands:
        return min(8, M8), hidden              # forced; nothing better available
    for cand in (1024, 512, 256, 128, 64, 32, 16, 8):
        tm_c = min(cand, M8)
        for th_c in th_cands:
            if _tiled_vmem_bytes(tm_c, th_c, dim, hidden, in_bpe, out_bpe) <= budget:
                return tm_c, th_c
    return min(8, M8), th_cands[-1]


# --------------------------------------------------------------------------- #
# Forward wrapper
# --------------------------------------------------------------------------- #
def glu_feedforward(x, params, *, tm=None, th=None):
    """x: [..., dim]; params from prepare_glu_ffn_params."""
    w12_t, b12, w2_t, b2_r = params
    dim = w12_t.shape[0]
    hidden = w2_t.shape[0]
    assert x.shape[-1] == dim

    orig_shape = x.shape
    out_dtype = x.dtype
    M = 1
    for s in orig_shape[:-1]:
        M *= s
    x2 = x.reshape(M, dim).astype(w12_t.dtype)

    in_bpe = x2.dtype.itemsize
    out_bpe = jnp.dtype(out_dtype).itemsize

    cap = _tpu_vmem_capacity_bytes()
    budget = int(cap * 0.6)
    vmem_limit = int(cap * 0.7)

    M8 = ((M + 7) // 8) * 8
    if tm is None or th is None:
        tm_auto, th_auto = _choose_tiles(M8, dim, hidden, in_bpe, out_bpe, budget)
        tm = tm_auto if tm is None else tm
        th = th_auto if th is None else th

    # Pad rows to a multiple of tm (keeps (8,128)-aligned tiles; never a single
    # giant tile for ragged M).
    Mp = ((M + tm - 1) // tm) * tm
    if Mp != M:
        x2 = jnp.pad(x2, ((0, Mp - M), (0, 0)))
    nM = Mp // tm

    if th == hidden:
        # ---- Preferred path: single hidden tile, fused fc1+gate projection ----
        out = pl.pallas_call(
            _glu_ffn_fused_kernel,
            out_shape=jax.ShapeDtypeStruct((Mp, dim), out_dtype),
            grid_spec=pltpu.PrefetchScalarGridSpec(
                num_scalar_prefetch=0,
                grid=(nM,),
                in_specs=[
                    pl.BlockSpec((tm, dim), lambda i: (i, 0)),          # x rows
                    pl.BlockSpec((dim, 2 * hidden), lambda i: (0, 0)),  # W12 (const)
                    pl.BlockSpec((1, 2 * hidden), lambda i: (0, 0)),    # b12
                    pl.BlockSpec((hidden, dim), lambda i: (0, 0)),      # W2 (const)
                    pl.BlockSpec((1, dim), lambda i: (0, 0)),           # b2
                ],
                out_specs=pl.BlockSpec((tm, dim), lambda i: (i, 0)),
            ),
            compiler_params=pltpu.CompilerParams(
                dimension_semantics=("parallel",),
                vmem_limit_bytes=vmem_limit,
            ),
        )(x2, w12_t, b12, w2_t, b2_r)
    else:
        # ---- Fallback path: hidden tiled as last ("arbitrary") grid axis ----
        nH = hidden // th
        out = pl.pallas_call(
            _glu_ffn_tiled_kernel,
            out_shape=jax.ShapeDtypeStruct((Mp, dim), out_dtype),
            grid_spec=pltpu.PrefetchScalarGridSpec(
                num_scalar_prefetch=0,
                grid=(nM, nH),
                in_specs=[
                    pl.BlockSpec((tm, dim), lambda i, h: (i, 0)),        # x rows
                    pl.BlockSpec((dim, th), lambda i, h: (0, h)),        # W1^T slice
                    pl.BlockSpec((1, th), lambda i, h: (0, h)),          # b1 slice
                    pl.BlockSpec((dim, th), lambda i, h: (0, h + nH)),   # Wg^T slice
                    pl.BlockSpec((1, th), lambda i, h: (0, h + nH)),     # bg slice
                    pl.BlockSpec((th, dim), lambda i, h: (h, 0)),        # W2^T slice
                    pl.BlockSpec((1, dim), lambda i, h: (0, 0)),         # b2
                ],
                out_specs=pl.BlockSpec((tm, dim), lambda i, h: (i, 0)),
                scratch_shapes=[pltpu.VMEM((tm, dim), jnp.float32)],
            ),
            compiler_params=pltpu.CompilerParams(
                dimension_semantics=("parallel", "arbitrary"),
                vmem_limit_bytes=vmem_limit,
            ),
        )(x2, w12_t, b12, w12_t, b12, w2_t, b2_r)

    if Mp != M:
        out = out[:M]
    return out.reshape(orig_shape)


# --------------------------------------------------------------------------- #
# Reference (eval-mode PyTorch semantics) + demo
# --------------------------------------------------------------------------- #
def _reference(x, w1, b1, wg, bg, w2, b2):
    fc1 = x @ w1.T + b1
    gate = x @ wg.T + bg
    combined = jax.nn.sigmoid(gate) * fc1
    return combined @ w2.T + b2        # dropout is identity in eval mode


if __name__ == "__main__":
    # Small but lane-dense shapes: feature dims are multiples of 128 so the
    # MXU contraction and output stores are full-width.
    B, S = 2, 8
    dim, hidden = 128, 256

    rng = jax.random.PRNGKey(0)
    ks = jax.random.split(rng, 7)
    x = jax.random.normal(ks[0], (B, S, dim), dtype=jnp.float32)
    w1 = jax.random.normal(ks[1], (hidden, dim), dtype=jnp.float32) * 0.05
    b1 = jax.random.normal(ks[2], (hidden,), dtype=jnp.float32) * 0.05
    wg = jax.random.normal(ks[3], (hidden, dim), dtype=jnp.float32) * 0.05
    bg = jax.random.normal(ks[4], (hidden,), dtype=jnp.float32) * 0.05
    w2 = jax.random.normal(ks[5], (dim, hidden), dtype=jnp.float32) * 0.05
    b2 = jax.random.normal(ks[6], (dim,), dtype=jnp.float32) * 0.05

    # One-time parameter prep (transpose + concat + bf16 cast), then forward.
    params = prepare_glu_ffn_params(w1, b1, wg, bg, w2, b2,
                                    compute_dtype=jnp.bfloat16)
    out = glu_feedforward(x, params)
    out = jax.block_until_ready(out)

    ref = _reference(x, w1, b1, wg, bg, w2, b2)
    assert out.shape == (B, S, dim)
    # bf16 MXU operands with f32 accumulation -> loosened tolerance vs f32 ref.
    max_err = float(jnp.max(jnp.abs(out.astype(jnp.float32) - ref)))
    assert jnp.allclose(out.astype(jnp.float32), ref, atol=2e-2, rtol=2e-2), (
        f"mismatch vs reference (max abs err {max_err})")

    print("KERNEL_OK")
</pallas_src>

<mosaic_0001>
module attributes {stable_mosaic.version = 11 : i64} {
  func.func @_glu_ffn_fused_kernel(%arg0: i32, %arg1: memref<16x128xbf16, #tpu.memory_space<vmem>>, %arg2: memref<128x512xbf16, #tpu.memory_space<vmem>>, %arg3: memref<1x512xf32, #tpu.memory_space<vmem>>, %arg4: memref<256x128xbf16, #tpu.memory_space<vmem>>, %arg5: memref<1x128xf32, #tpu.memory_space<vmem>>, %arg6: memref<16x128xf32, #tpu.memory_space<vmem>>) attributes {dimension_semantics = [#tpu.dimension_semantics<parallel>], iteration_bounds = array<i64: 1>, scalar_prefetch = 0 : i64, scratch_operands = 0 : i64, tpu.core_type = #tpu.core_type<tc>, window_params = [{transform_indices = @transform_0, window_bounds = array<i64: 16, 128>}, {pipeline_mode = #tpu.pipeline_mode<synchronous>, transform_indices = @transform_1, window_bounds = array<i64: 128, 512>}, {pipeline_mode = #tpu.pipeline_mode<synchronous>, transform_indices = @transform_2, window_bounds = array<i64: 1, 512>}, {pipeline_mode = #tpu.pipeline_mode<synchronous>, transform_indices = @transform_3, window_bounds = array<i64: 256, 128>}, {pipeline_mode = #tpu.pipeline_mode<synchronous>, transform_indices = @transform_4, window_bounds = array<i64: 1, 128>}, {transform_indices = @transform_5, window_bounds = array<i64: 16, 128>}]} {
    %c0 = arith.constant 0 : index
    %c0_0 = arith.constant 0 : index
    %0 = vector.load %arg1[%c0, %c0_0] : memref<16x128xbf16, #tpu.memory_space<vmem>>, vector<16x128xbf16>
    %c0_1 = arith.constant 0 : index
    %c0_2 = arith.constant 0 : index
    %1 = vector.load %arg2[%c0_1, %c0_2] : memref<128x512xbf16, #tpu.memory_space<vmem>>, vector<128x512xbf16>
    %cst = arith.constant dense<0.000000e+00> : vector<16x512xf32>
    %2 = tpu.matmul %0, %1, %cst {dimension_numbers = #tpu.dot_dimension_numbers<[1], [0], [0], [1], [0, 0, 1, 1], [], []>} : vector<16x128xbf16>, vector<128x512xbf16>, vector<16x512xf32> -> vector<16x512xf32>
    %c0_3 = arith.constant 0 : index
    %c0_4 = arith.constant 0 : index
    %3 = vector.load %arg3[%c0_3, %c0_4] : memref<1x512xf32, #tpu.memory_space<vmem>>, vector<1x512xf32>
    %4 = vector.broadcast %3 : vector<1x512xf32> to vector<16x512xf32>
    %5 = arith.addf %2, %4 : vector<16x512xf32>
    %6 = vector.extract_strided_slice %5 {offsets = [0, 0], sizes = [16, 256], strides = [1, 1]} : vector<16x512xf32> to vector<16x256xf32>
    %7 = vector.extract_strided_slice %5 {offsets = [0, 256], sizes = [16, 256], strides = [1, 1]} : vector<16x512xf32> to vector<16x256xf32>
    %8 = arith.negf %7 : vector<16x256xf32>
    %9 = math.exp %8 : vector<16x256xf32>
    %cst_5 = arith.constant 1.000000e+00 : f32
    %10 = vector.broadcast %cst_5 : f32 to vector<16x256xf32>
    %11 = arith.addf %10, %9 : vector<16x256xf32>
    %12 = arith.divf %10, %11 : vector<16x256xf32>
    %13 = arith.mulf %12, %6 : vector<16x256xf32>
    %14 = arith.truncf %13 : vector<16x256xf32> to vector<16x256xbf16>
    %c0_6 = arith.constant 0 : index
    %c0_7 = arith.constant 0 : index
    %15 = vector.load %arg4[%c0_6, %c0_7] : memref<256x128xbf16, #tpu.memory_space<vmem>>, vector<256x128xbf16>
    %cst_8 = arith.constant dense<0.000000e+00> : vector<16x128xf32>
    %16 = tpu.matmul %14, %15, %cst_8 {dimension_numbers = #tpu.dot_dimension_numbers<[1], [0], [0], [1], [0, 0, 1, 1], [], []>} : vector<16x256xbf16>, vector<256x128xbf16>, vector<16x128xf32> -> vector<16x128xf32>
    %c0_9 = arith.constant 0 : index
    %c0_10 = arith.constant 0 : index
    %17 = vector.load %arg5[%c0_9, %c0_10] : memref<1x128xf32, #tpu.memory_space<vmem>>, vector<1x128xf32>
    %18 = vector.broadcast %17 : vector<1x128xf32> to vector<16x128xf32>
    %19 = arith.addf %16, %18 : vector<16x128xf32>
    %c0_11 = arith.constant 0 : index
    %c0_12 = arith.constant 0 : index
    %20 = vector.load %arg6[%c0_11, %c0_12] : memref<16x128xf32, #tpu.memory_space<vmem>>, vector<16x128xf32>
    tpu.vector_store %arg6[%c0_11, %c0_12], %19 {strides = array<i32>} : memref<16x128xf32, #tpu.memory_space<vmem>>, vector<16x128xf32>,
    return
  }
  func.func @transform_0(%arg0: i32) -> (i32, i32) {
    %c0_i32 = arith.constant 0 : i32
    %c0_i32_0 = arith.constant 0 : i32
    return %arg0, %c0_i32 : i32, i32
  }
  func.func @transform_1(%arg0: i32) -> (i32, i32) {
    %c0_i32 = arith.constant 0 : i32
    %c0_i32_0 = arith.constant 0 : i32
    %c0_i32_1 = arith.constant 0 : i32
    return %c0_i32, %c0_i32_0 : i32, i32
  }
  func.func @transform_2(%arg0: i32) -> (i32, i32) {
    %c0_i32 = arith.constant 0 : i32
    %c0_i32_0 = arith.constant 0 : i32
    %c0_i32_1 = arith.constant 0 : i32
    return %c0_i32, %c0_i32_0 : i32, i32
  }
  func.func @transform_3(%arg0: i32) -> (i32, i32) {
    %c0_i32 = arith.constant 0 : i32
    %c0_i32_0 = arith.constant 0 : i32
    %c0_i32_1 = arith.constant 0 : i32
    return %c0_i32, %c0_i32_0 : i32, i32
  }
  func.func @transform_4(%arg0: i32) -> (i32, i32) {
    %c0_i32 = arith.constant 0 : i32
    %c0_i32_0 = arith.constant 0 : i32
    %c0_i32_1 = arith.constant 0 : i32
    return %c0_i32, %c0_i32_0 : i32, i32
  }
  func.func @transform_5(%arg0: i32) -> (i32, i32) {
    %c0_i32 = arith.constant 0 : i32
    %c0_i32_0 = arith.constant 0 : i32
    return %arg0, %c0_i32 : i32, i32
  }
}

</mosaic_0001>

<llo_original>
// kernel: tpu_custom_call.1
$region0: #{tpu_custom_call.1}
  #allocation0 [shape = 'u32[]', space=smem, size = 0x4, offset = 0x4, fixed_abs, tag = 'smem constant byte address 0x4 - core index']
  #allocation1 [shape = 'u32[72,128]{1,0:T(1,128)}', space=vmem, size = 0x9000, scoped, tag = 'internal scratch']
  %s0 = inlined_call_operand.hbm [shape: bf16[16,128], index: 0, kind: input, shape index: {}]
  %s1 = inlined_call_operand.hbm [shape: bf16[128,512], index: 1, kind: input, shape index: {}]
  %s2 = inlined_call_operand.hbm [shape: f32[1,512], index: 2, kind: input, shape index: {}]
  %s3 = inlined_call_operand.hbm [shape: bf16[256,128], index: 3, kind: input, shape index: {}]
  %s4 = inlined_call_operand.vmem [shape: f32[1,128], index: 4, kind: input, shape index: {}]
  %s5 = inlined_call_operand.hbm [shape: f32[16,128], index: 5, kind: output, shape index: {}]
  %s6 = sld [smem:[#allocation0]]
  $region46: #{tpu_custom_call.1} parent=0
    _
  %s8 = ssub.s32 1, %s6
  %s9 = scalar_select 0, %s8, %s6
  $region1: #{tpu_custom_call.1} parent=0
    #allocation2 [shape = 'u8[4096]{0}', space=vmem, size = 0x1000, scoped, tag = 'input window, operand 0, single buffered']
    #allocation3 [shape = 's32[1]{0}', space=sflag, size = 0x4, scoped, tag = 'scoped memory for tpu_custom_call.1']
    #allocation4 [shape = 's32[1]{0}', space=sflag, size = 0x4, scoped, tag = 'scoped memory for tpu_custom_call.1']
    #allocation5 [shape = 'u8[131072]{0}', space=vmem, size = 0x20000, scoped, tag = 'input window, operand 1, single buffered']
    #allocation6 [shape = 's32[1]{0}', space=sflag, size = 0x4, scoped, tag = 'scoped memory for tpu_custom_call.1']
    #allocation7 [shape = 'u8[2048]{0}', space=vmem, size = 0x800, scoped, tag = 'input window, operand 2, single buffered']
    #allocation8 [shape = 'u8[65536]{0}', space=vmem, size = 0x10000, scoped, tag = 'input window, operand 3, single buffered']
    #allocation9 [shape = 's32[1]{0}', space=sflag, size = 0x4, scoped, tag = 'scoped memory for tpu_custom_call.1']
    #allocation10 [shape = 'u8[8192]{0}', space=vmem, size = 0x2000, scoped, tag = 'output window, operand 0, single buffered']
    %10 = vsyncpa [#allocation3], 0
    %11 = vsyncpa [#allocation6], 0
    %12 = vsyncpa [#allocation9], 0
    %13 = vsyncpa [#allocation4], 0
    // Predicated region
    $region2: #{tpu_custom_call.1} parent=1 // pred_check
      _
    $region3: #{tpu_custom_call.1} parent=1 // pred_check_branch
      %15 = sbr.rel (0) target = $region5
    $region4: #{tpu_custom_call.1} parent=1 // pred_region
      %17 = vsyncadd [#allocation3], 0
      %s18 = sshll.u32 %s0, 4
      %s19 = int_to_ptr.hbm [resolvable:$true] %s18
      %s20 = sshll.u32 [#allocation2], 4
      %s21 = int_to_ptr.vmem [resolvable:$true] %s20
      %26 = dma.hbm_to_vmem [thread:$0]  %s19, 128, %s21, [#allocation3], 64, 64, 4
    $region5: #{tpu_custom_call.1} parent=1 // pred_fallthru
      _
    // Predicated region
    $region6: #{tpu_custom_call.1} parent=1 // pred_check
      _
    $region7: #{tpu_custom_call.1} parent=1 // pred_check_branch
      %28 = sbr.rel (0) target = $region9
    $region8: #{tpu_custom_call.1} parent=1 // pred_region
      %30 = vsyncadd [#allocation6], 0
      %s31 = sshll.u32 %s1, 4
      %s32 = int_to_ptr.hbm [resolvable:$true] %s31
      %s33 = sshll.u32 [#allocation5], 4
      %s34 = int_to_ptr.vmem [resolvable:$true] %s33
      %39 = dma.hbm_to_vmem [thread:$0]  %s32, 4096, %s34, [#allocation6], 256, 256, 16
    $region9: #{tpu_custom_call.1} parent=1 // pred_fallthru
      _
    // Predicated region
    $region10: #{tpu_custom_call.1} parent=1 // pred_check
      _
    $region11: #{tpu_custom_call.1} parent=1 // pred_check_branch
      %41 = sbr.rel (0) target = $region13
    $region12: #{tpu_custom_call.1} parent=1 // pred_region
      %43 = vsyncadd [#allocation6], 0
      %s45 = sshll.u32 %s2, 4
      %s46 = int_to_ptr.hbm [resolvable:$true] %s45
      %s47 = sshll.u32 [#allocation7], 4
      %s48 = int_to_ptr.vmem [resolvable:$true] %s47
      %50 = dma.hbm_to_vmem [thread:$0]  %s46, 64, %s48, [#allocation6]
    $region13: #{tpu_custom_call.1} parent=1 // pred_fallthru
      _
    // Predicated region
    $region14: #{tpu_custom_call.1} parent=1 // pred_check
      _
    $region15: #{tpu_custom_call.1} parent=1 // pred_check_branch
      %52 = sbr.rel (0) target = $region17
    $region16: #{tpu_custom_call.1} parent=1 // pred_region
      %54 = vsyncadd [#allocation9], 0
      %s55 = sshll.u32 %s3, 4
      %s56 = int_to_ptr.hbm [resolvable:$true] %s55
      %s57 = sshll.u32 [#allocation8], 4
      %s58 = int_to_ptr.vmem [resolvable:$true] %s57
      %63 = dma.hbm_to_vmem [thread:$0]  %s56, 2048, %s58, [#allocation9], 64, 64, 4
    $region17: #{tpu_custom_call.1} parent=1 // pred_fallthru
      _
    // Predicated region
    $region18: #{tpu_custom_call.1} parent=1 // pred_check
      _
    $region19: #{tpu_custom_call.1} parent=1 // pred_check_branch
      %65 = sbr.rel (0) target = $region21
    $region20: #{tpu_custom_call.1} parent=1 // pred_region
      _
    $region21: #{tpu_custom_call.1} parent=1 // pred_fallthru
      _
    // Predicated region
    $region22: #{tpu_custom_call.1} parent=1 // pred_check
      _
    $region23: #{tpu_custom_call.1} parent=1 // pred_check_branch
      %67 = sbr.rel (0) target = $region25
    $region24: #{tpu_custom_call.1} parent=1 // pred_region
      %69 = dma.done [#allocation3], 128
    $region25: #{tpu_custom_call.1} parent=1 // pred_fallthru
      _
    // Predicated region
    $region26: #{tpu_custom_call.1} parent=1 // pred_check
      _
    $region27: #{tpu_custom_call.1} parent=1 // pred_check_branch
      %71 = sbr.rel (0) target = $region29
    $region28: #{tpu_custom_call.1} parent=1 // pred_region
      %73 = dma.done [#allocation6], 4096
    $region29: #{tpu_custom_call.1} parent=1 // pred_fallthru
      _
    // Predicated region
    $region30: #{tpu_custom_call.1} parent=1 // pred_check
      _
    $region31: #{tpu_custom_call.1} parent=1 // pred_check_branch
      %75 = sbr.rel (0) target = $region33
    $region32: #{tpu_custom_call.1} parent=1 // pred_region
      %77 = dma.done [#allocation6], 64
    $region33: #{tpu_custom_call.1} parent=1 // pred_fallthru
      _
    // Predicated region
    $region34: #{tpu_custom_call.1} parent=1 // pred_check
      _
    $region35: #{tpu_custom_call.1} parent=1 // pred_check_branch
      %79 = sbr.rel (0) target = $region37
    $region36: #{tpu_custom_call.1} parent=1 // pred_region
      %81 = dma.done [#allocation9], 2048
    $region37: #{tpu_custom_call.1} parent=1 // pred_fallthru
      _
    %v82 = vld [vmem:[#allocation2] sm:$0xf]
    %v83 = vld [vmem:[#allocation2 + $0x4] sm:$0xf]
    %v84 = vld [vmem:[#allocation5] sm:$0xff]
    %v85 = vld [vmem:[#allocation5 + $0x8] sm:$0xff]
    %v86 = vld [vmem:[#allocation5 + $0x10] sm:$0xff]
    %v87 = vld [vmem:[#allocation5 + $0x18] sm:$0xff]
    %v88 = vld [vmem:[#allocation5 + $0x20] sm:$0xff]
    %v89 = vld [vmem:[#allocation5 + $0x28] sm:$0xff]
    %v90 = vld [vmem:[#allocation5 + $0x30] sm:$0xff]
    %v91 = vld [vmem:[#allocation5 + $0x38] sm:$0xff]
    %v92 = vld [vmem:[#allocation5 + $0x40] sm:$0xff]
    %v93 = vld [vmem:[#allocation5 + $0x48] sm:$0xff]
    %v94 = vld [vmem:[#allocation5 + $0x50] sm:$0xff]
    %v95 = vld [vmem:[#allocation5 + $0x58] sm:$0xff]
    %v96 = vld [vmem:[#allocation5 + $0x60] sm:$0xff]
    %v97 = vld [vmem:[#allocation5 + $0x68] sm:$0xff]
    %v98 = vld [vmem:[#allocation5 + $0x70] sm:$0xff]
    %v99 = vld [vmem:[#allocation5 + $0x78] sm:$0xff]
    %v100 = vld [vmem:[#allocation5 + $0x80] sm:$0xff]
    %v101 = vld [vmem:[#allocation5 + $0x88] sm:$0xff]
    %v102 = vld [vmem:[#allocation5 + $0x90] sm:$0xff]
    %v103 = vld [vmem:[#allocation5 + $0x98] sm:$0xff]
    %v104 = vld [vmem:[#allocation5 + $0xa0] sm:$0xff]
    %v105 = vld [vmem:[#allocation5 + $0xa8] sm:$0xff]
    %v106 = vld [vmem:[#allocation5 + $0xb0] sm:$0xff]
    %v107 = vld [vmem:[#allocation5 + $0xb8] sm:$0xff]
    %v108 = vld [vmem:[#allocation5 + $0xc0] sm:$0xff]
    %v109 = vld [vmem:[#allocation5 + $0xc8] sm:$0xff]
    %v110 = vld [vmem:[#allocation5 + $0xd0] sm:$0xff]
    %v111 = vld [vmem:[#allocation5 + $0xd8] sm:$0xff]
    %v112 = vld [vmem:[#allocation5 + $0xe0] sm:$0xff]
    %v113 = vld [vmem:[#allocation5 + $0xe8] sm:$0xff]
    %v114 = vld [vmem:[#allocation5 + $0xf0] sm:$0xff]
    %v115 = vld [vmem:[#allocation5 + $0xf8] sm:$0xff]
    %v116 = vld [vmem:[#allocation7] sm:$0xf]
    %v118 = vperm.slane %v116, 0
    %v119 = vperm.slane %v116, 1
    %v120 = vperm.slane %v116, 2
    %v121 = vperm.slane %v116, 3
    %v128 = vunpack.c.l.b16 %v82
    %v129 = vunpack.c.l.b16 %v83
    %v130 = vpack.c.b16 %v129, %v128
    %v164 = vunpack.c.l.b16 %v84
    %v165 = vunpack.c.h.b16 %v84
    %v166 = vunpack.c.l.b16 %v85
    %v167 = vunpack.c.h.b16 %v85
    %v168 = vunpack.c.l.b16 %v86
    %v169 = vunpack.c.h.b16 %v86
    %v170 = vunpack.c.l.b16 %v87
    %v171 = vunpack.c.h.b16 %v87
    %v172 = vunpack.c.l.b16 %v88
    %v173 = vunpack.c.h.b16 %v88
    %v174 = vunpack.c.l.b16 %v89
    %v175 = vunpack.c.h.b16 %v89
    %v176 = vunpack.c.l.b16 %v90
    %v177 = vunpack.c.h.b16 %v90
    %v178 = vunpack.c.l.b16 %v91
    %v179 = vunpack.c.h.b16 %v91
    %v180 = vunpack.c.l.b16 %v92
    %v181 = vunpack.c.h.b16 %v92
    %v182 = vunpack.c.l.b16 %v93
    %v183 = vunpack.c.h.b16 %v93
    %v184 = vunpack.c.l.b16 %v94
    %v185 = vunpack.c.h.b16 %v94
    %v186 = vunpack.c.l.b16 %v95
    %v187 = vunpack.c.h.b16 %v95
    %v188 = vunpack.c.l.b16 %v96
    %v189 = vunpack.c.h.b16 %v96
    %v190 = vunpack.c.l.b16 %v97
    %v191 = vunpack.c.h.b16 %v97
    %v192 = vunpack.c.l.b16 %v98
    %v193 = vunpack.c.h.b16 %v98
    %v194 = vunpack.c.l.b16 %v99
    %v195 = vunpack.c.h.b16 %v99
    %v196 = vunpack.c.l.b16 %v100
    %v197 = vunpack.c.h.b16 %v100
    %v198 = vunpack.c.l.b16 %v101
    %v199 = vunpack.c.h.b16 %v101
    %v200 = vunpack.c.l.b16 %v102
    %v201 = vunpack.c.h.b16 %v102
    %v202 = vunpack.c.l.b16 %v103
    %v203 = vunpack.c.h.b16 %v103
    %v204 = vunpack.c.l.b16 %v104
    %v205 = vunpack.c.h.b16 %v104
    %v206 = vunpack.c.l.b16 %v105
    %v207 = vunpack.c.h.b16 %v105
    %v208 = vunpack.c.l.b16 %v106
    %v209 = vunpack.c.h.b16 %v106
    %v210 = vunpack.c.l.b16 %v107
    %v211 = vunpack.c.h.b16 %v107
    %v212 = vunpack.c.l.b16 %v108
    %v213 = vunpack.c.h.b16 %v108
    %v214 = vunpack.c.l.b16 %v109
    %v215 = vunpack.c.h.b16 %v109
    %v216 = vunpack.c.l.b16 %v110
    %v217 = vunpack.c.h.b16 %v110
    %v218 = vunpack.c.l.b16 %v111
    %v219 = vunpack.c.h.b16 %v111
    %v220 = vunpack.c.l.b16 %v112
    %v221 = vunpack.c.h.b16 %v112
    %v222 = vunpack.c.l.b16 %v113
    %v223 = vunpack.c.h.b16 %v113
    %v224 = vunpack.c.l.b16 %v114
    %v225 = vunpack.c.h.b16 %v114
    %v226 = vunpack.c.l.b16 %v115
    %v227 = vunpack.c.h.b16 %v115
    %v228 = vpack.c.b16 %v168, %v164
    %v229 = vpack.c.b16 %v169, %v165
    %v230 = vpack.c.b16 %v170, %v166
    %v231 = vpack.c.b16 %v171, %v167
    %v232 = vpack.c.b16 %v176, %v172
    %v233 = vpack.c.b16 %v177, %v173
    %v234 = vpack.c.b16 %v178, %v174
    %v235 = vpack.c.b16 %v179, %v175
    %v236 = vpack.c.b16 %v184, %v180
    %v237 = vpack.c.b16 %v185, %v181
    %v238 = vpack.c.b16 %v186, %v182
    %v239 = vpack.c.b16 %v187, %v183
    %v240 = vpack.c.b16 %v192, %v188
    %v241 = vpack.c.b16 %v193, %v189
    %v242 = vpack.c.b16 %v194, %v190
    %v243 = vpack.c.b16 %v195, %v191
    %v244 = vpack.c.b16 %v200, %v196
    %v245 = vpack.c.b16 %v201, %v197
    %v246 = vpack.c.b16 %v202, %v198
    %v247 = vpack.c.b16 %v203, %v199
    %v248 = vpack.c.b16 %v208, %v204
    %v249 = vpack.c.b16 %v209, %v205
    %v250 = vpack.c.b16 %v210, %v206
    %v251 = vpack.c.b16 %v211, %v207
    %v252 = vpack.c.b16 %v216, %v212
    %v253 = vpack.c.b16 %v217, %v213
    %v254 = vpack.c.b16 %v218, %v214
    %v255 = vpack.c.b16 %v219, %v215
    %v256 = vpack.c.b16 %v224, %v220
    %v257 = vpack.c.b16 %v225, %v221
    %v258 = vpack.c.b16 %v226, %v222
    %v259 = vpack.c.b16 %v227, %v223
    %292 = vmatpush.bf16.msra.mxu0 %v256
    %293 = vmatpush.bf16.msra.mxu0 %v252
    %294 = vmatpush.bf16.msra.mxu0 %v248
    %295 = vmatpush.bf16.msra.mxu0 %v244
    %296 = vmatpush.bf16.msra.mxu0 %v240
    %297 = vmatpush.bf16.msra.mxu0 %v236
    %298 = vmatpush.bf16.msra.mxu0 %v232
    %299 = vmatpush.bf16.msra.mxu0 %v228
    %300 = vmatmul.bf16.gmra.mxu0 %v130
    %v301 = vpop.f32.mrf.mxu0
    %v302 = vadd.f32 %v118, %v301
    %v303 = vpop.f32.mrf.mxu0
    %v304 = vadd.f32 %v118, %v303
    %305 = vdwg.mxu0
    %306 = vmatpush.bf16.msra.mxu0 %v257
    %307 = vmatpush.bf16.msra.mxu0 %v253
    %308 = vmatpush.bf16.msra.mxu0 %v249
    %309 = vmatpush.bf16.msra.mxu0 %v245
    %310 = vmatpush.bf16.msra.mxu0 %v241
    %311 = vmatpush.bf16.msra.mxu0 %v237
    %312 = vmatpush.bf16.msra.mxu0 %v233
    %313 = vmatpush.bf16.msra.mxu0 %v229
    %314 = vmatmul.bf16.gmra.mxu0 %v130
    %v315 = vpop.f32.mrf.mxu0
    %v316 = vadd.f32 %v119, %v315
    %v317 = vpop.f32.mrf.mxu0
    %v318 = vadd.f32 %v119, %v317
    %319 = vdwg.mxu0
    %320 = vmatpush.bf16.msra.mxu0 %v258
    %321 = vmatpush.bf16.msra.mxu0 %v254
    %322 = vmatpush.bf16.msra.mxu0 %v250
    %323 = vmatpush.bf16.msra.mxu0 %v246
    %324 = vmatpush.bf16.msra.mxu0 %v242
    %325 = vmatpush.bf16.msra.mxu0 %v238
    %326 = vmatpush.bf16.msra.mxu0 %v234
    %327 = vmatpush.bf16.msra.mxu0 %v230
    %328 = vmatmul.bf16.gmra.mxu0 %v130
    %v329 = vpop.f32.mrf.mxu0
    %v330 = vadd.f32 %v120, %v329
    %v331 = vpop.f32.mrf.mxu0
    %v332 = vadd.f32 %v120, %v331
    %333 = vdwg.mxu0
    %334 = vmatpush.bf16.msra.mxu0 %v259
    %335 = vmatpush.bf16.msra.mxu0 %v255
    %336 = vmatpush.bf16.msra.mxu0 %v251
    %337 = vmatpush.bf16.msra.mxu0 %v247
    %338 = vmatpush.bf16.msra.mxu0 %v243
    %339 = vmatpush.bf16.msra.mxu0 %v239
    %340 = vmatpush.bf16.msra.mxu0 %v235
    %341 = vmatpush.bf16.msra.mxu0 %v231
    %342 = vmatmul.bf16.gmra.mxu0 %v130
    %v343 = vpop.f32.mrf.mxu0
    %v344 = vadd.f32 %v121, %v343
    %v345 = vpop.f32.mrf.mxu0
    %v346 = vadd.f32 %v121, %v345
    %347 = vdwg.mxu0
    %v348 = vxor.u32 %v330, 2147483648
    %v349 = vxor.u32 %v344, 2147483648
    %v350 = vxor.u32 %v332, 2147483648
    %v351 = vxor.u32 %v346, 2147483648
    %v352 = vmul.f32 %v348, 1.442695
    %v353 = vpow.pop %v352
    %v354 = vmul.f32 %v349, 1.442695
    %v355 = vpow.pop %v354
    %v356 = vmul.f32 %v350, 1.442695
    %v357 = vpow.pop %v356
    %v358 = vmul.f32 %v351, 1.442695
    %v359 = vpow.pop %v358
    %v360 = vadd.f32 %v353, 1.0
    %v361 = vadd.f32 %v355, 1.0
    %v362 = vadd.f32 %v357, 1.0
    %v363 = vadd.f32 %v359, 1.0
    %v364 = vrcp.pop %v360
    %v365 = vmul.f32 %v360, %v364
    %v366 = vsub.f32 1.0, %v365
    %v367 = vmul.f32 %v364, %v366
    %v368 = vadd.f32 %v364, %v367
    %vm369 = vweird.f32 %v360
    %vm370 = vweird.f32 %v364
    %vm371 = vmor %vm369, %vm370
    %v372 = vsel %vm371, %v364, %v368
    %v373 = vand.u32 2147483647, %v360
    %vm374 = vcmp.eq.f32.partialorder %v373, 8.507059e+37
    %v375 = vand.u32 %v360, 2147483648
    %v376 = vor.u32 1.1754944e-38, %v375
    %v377 = vsel %vm374, %v376, %v372
    %v378 = vmul.f32 1.0, %v377
    %v379 = vrcp.pop %v361
    %v380 = vmul.f32 %v361, %v379
    %v381 = vsub.f32 1.0, %v380
    %v382 = vmul.f32 %v379, %v381
    %v383 = vadd.f32 %v379, %v382
    %vm384 = vweird.f32 %v361
    %vm385 = vweird.f32 %v379
    %vm386 = vmor %vm384, %vm385
    %v387 = vsel %vm386, %v379, %v383
    %v388 = vand.u32 2147483647, %v361
    %vm389 = vcmp.eq.f32.partialorder %v388, 8.507059e+37
    %v390 = vand.u32 %v361, 2147483648
    %v391 = vor.u32 1.1754944e-38, %v390
    %v392 = vsel %vm389, %v391, %v387
    %v393 = vmul.f32 1.0, %v392
    %v394 = vrcp.pop %v362
    %v395 = vmul.f32 %v362, %v394
    %v396 = vsub.f32 1.0, %v395
    %v397 = vmul.f32 %v394, %v396
    %v398 = vadd.f32 %v394, %v397
    %vm399 = vweird.f32 %v362
    %vm400 = vweird.f32 %v394
    %vm401 = vmor %vm399, %vm400
    %v402 = vsel %vm401, %v394, %v398
    %v403 = vand.u32 2147483647, %v362
    %vm404 = vcmp.eq.f32.partialorder %v403, 8.507059e+37
    %v405 = vand.u32 %v362, 2147483648
    %v406 = vor.u32 1.1754944e-38, %v405
    %v407 = vsel %vm404, %v406, %v402
    %v408 = vmul.f32 1.0, %v407
    %v409 = vrcp.pop %v363
    %v410 = vmul.f32 %v363, %v409
    %v411 = vsub.f32 1.0, %v410
    %v412 = vmul.f32 %v409, %v411
    %v413 = vadd.f32 %v409, %v412
    %vm414 = vweird.f32 %v363
    %vm415 = vweird.f32 %v409
    %vm416 = vmor %vm414, %vm415
    %v417 = vsel %vm416, %v409, %v413
    %v418 = vand.u32 2147483647, %v363
    %vm419 = vcmp.eq.f32.partialorder %v418, 8.507059e+37
    %v420 = vand.u32 %v363, 2147483648
    %v421 = vor.u32 1.1754944e-38, %v420
    %v422 = vsel %vm419, %v421, %v417
    %v423 = vmul.f32 1.0, %v422
    %v424 = vmul.f32 %v378, %v302
    %v425 = vmul.f32 %v393, %v316
    %v426 = vmul.f32 %v408, %v304
    %v427 = vmul.f32 %v423, %v318
    %v428 = vpack.c.bf16 %v426, %v424
    %v429 = vpack.c.bf16 %v427, %v425
    %v430 = vld [vmem:[#allocation8] sm:$0xf]
    %v431 = vld [vmem:[#allocation8 + $0x4] sm:$0xf]
    %v432 = vld [vmem:[#allocation8 + $0x8] sm:$0xf]
    %v433 = vld [vmem:[#allocation8 + $0xc] sm:$0xf]
    %v434 = vld [vmem:[#allocation8 + $0x10] sm:$0xf]
    %v435 = vld [vmem:[#allocation8 + $0x14] sm:$0xf]
    %v436 = vld [vmem:[#allocation8 + $0x18] sm:$0xf]
    %v437 = vld [vmem:[#allocation8 + $0x1c] sm:$0xf]
    %v438 = vld [vmem:[#allocation8 + $0x20] sm:$0xf]
    %v439 = vld [vmem:[#allocation8 + $0x24] sm:$0xf]
    %v440 = vld [vmem:[#allocation8 + $0x28] sm:$0xf]
    %v441 = vld [vmem:[#allocation8 + $0x2c] sm:$0xf]
    %v442 = vld [vmem:[#allocation8 + $0x30] sm:$0xf]
    %v443 = vld [vmem:[#allocation8 + $0x34] sm:$0xf]
    %v444 = vld [vmem:[#allocation8 + $0x38] sm:$0xf]
    %v445 = vld [vmem:[#allocation8 + $0x3c] sm:$0xf]
    %v446 = vld [vmem:[#allocation8 + $0x40] sm:$0xf]
    %v447 = vld [vmem:[#allocation8 + $0x44] sm:$0xf]
    %v448 = vld [vmem:[#allocation8 + $0x48] sm:$0xf]
    %v449 = vld [vmem:[#allocation8 + $0x4c] sm:$0xf]
    %v450 = vld [vmem:[#allocation8 + $0x50] sm:$0xf]
    %v451 = vld [vmem:[#allocation8 + $0x54] sm:$0xf]
    %v452 = vld [vmem:[#allocation8 + $0x58] sm:$0xf]
    %v453 = vld [vmem:[#allocation8 + $0x5c] sm:$0xf]
    %v454 = vld [vmem:[#allocation8 + $0x60] sm:$0xf]
    %v455 = vld [vmem:[#allocation8 + $0x64] sm:$0xf]
    %v456 = vld [vmem:[#allocation8 + $0x68] sm:$0xf]
    %v457 = vld [vmem:[#allocation8 + $0x6c] sm:$0xf]
    %v458 = vld [vmem:[#allocation8 + $0x70] sm:$0xf]
    %v459 = vld [vmem:[#allocation8 + $0x74] sm:$0xf]
    %v460 = vld [vmem:[#allocation8 + $0x78] sm:$0xf]
    %v461 = vld [vmem:[#allocation8 + $0x7c] sm:$0xf]
    %v462 = vld [vmem:[%s4] sm:$0x1]
    %v464 = vperm.slane %v462, 0
    %v498 = vunpack.c.l.b16 %v430
    %v499 = vunpack.c.l.b16 %v431
    %v500 = vunpack.c.l.b16 %v432
    %v501 = vunpack.c.l.b16 %v433
    %v502 = vunpack.c.l.b16 %v434
    %v503 = vunpack.c.l.b16 %v435
    %v504 = vunpack.c.l.b16 %v436
    %v505 = vunpack.c.l.b16 %v437
    %v506 = vunpack.c.l.b16 %v438
    %v507 = vunpack.c.l.b16 %v439
    %v508 = vunpack.c.l.b16 %v440
    %v509 = vunpack.c.l.b16 %v441
    %v510 = vunpack.c.l.b16 %v442
    %v511 = vunpack.c.l.b16 %v443
    %v512 = vunpack.c.l.b16 %v444
    %v513 = vunpack.c.l.b16 %v445
    %v514 = vunpack.c.l.b16 %v446
    %v515 = vunpack.c.l.b16 %v447
    %v516 = vunpack.c.l.b16 %v448
    %v517 = vunpack.c.l.b16 %v449
    %v518 = vunpack.c.l.b16 %v450
    %v519 = vunpack.c.l.b16 %v451
    %v520 = vunpack.c.l.b16 %v452
    %v521 = vunpack.c.l.b16 %v453
    %v522 = vunpack.c.l.b16 %v454
    %v523 = vunpack.c.l.b16 %v455
    %v524 = vunpack.c.l.b16 %v456
    %v525 = vunpack.c.l.b16 %v457
    %v526 = vunpack.c.l.b16 %v458
    %v527 = vunpack.c.l.b16 %v459
    %v528 = vunpack.c.l.b16 %v460
    %v529 = vunpack.c.l.b16 %v461
    %v530 = vpack.c.b16 %v499, %v498
    %v531 = vpack.c.b16 %v501, %v500
    %v532 = vpack.c.b16 %v503, %v502
    %v533 = vpack.c.b16 %v505, %v504
    %v534 = vpack.c.b16 %v507, %v506
    %v535 = vpack.c.b16 %v509, %v508
    %v536 = vpack.c.b16 %v511, %v510
    %v537 = vpack.c.b16 %v513, %v512
    %v538 = vpack.c.b16 %v515, %v514
    %v539 = vpack.c.b16 %v517, %v516
    %v540 = vpack.c.b16 %v519, %v518
    %v541 = vpack.c.b16 %v521, %v520
    %v542 = vpack.c.b16 %v523, %v522
    %v543 = vpack.c.b16 %v525, %v524
    %v544 = vpack.c.b16 %v527, %v526
    %v545 = vpack.c.b16 %v529, %v528
    %562 = vmatpush.bf16.msra.mxu0 %v537
    %563 = vmatpush.bf16.msra.mxu0 %v536
    %564 = vmatpush.bf16.msra.mxu0 %v535
    %565 = vmatpush.bf16.msra.mxu0 %v534
    %566 = vmatpush.bf16.msra.mxu0 %v533
    %567 = vmatpush.bf16.msra.mxu0 %v532
    %568 = vmatpush.bf16.msra.mxu0 %v531
    %569 = vmatpush.bf16.msra.mxu0 %v530
    %570 = vmatmul.bf16.gmra.mxu0 %v428
    %v571 = vpop.f32.mrf.mxu0
    %v572 = vadd.f32 %v464, %v571
    %v573 = vpop.f32.mrf.mxu0
    %v574 = vadd.f32 %v464, %v573
    %575 = vdwg.mxu0
    %576 = vmatpush.bf16.msra.mxu0 %v545
    %577 = vmatpush.bf16.msra.mxu0 %v544
    %578 = vmatpush.bf16.msra.mxu0 %v543
    %579 = vmatpush.bf16.msra.mxu0 %v542
    %580 = vmatpush.bf16.msra.mxu0 %v541
    %581 = vmatpush.bf16.msra.mxu0 %v540
    %582 = vmatpush.bf16.msra.mxu0 %v539
    %583 = vmatpush.bf16.msra.mxu0 %v538
    %584 = vmatmul.bf16.gmra.mxu0 %v429
    %v585 = vpop.f32.mrf.mxu0
    %v586 = vadd.f32 %v572, %v585
    %v587 = vpop.f32.mrf.mxu0
    %v588 = vadd.f32 %v574, %v587
    %589 = vdwg.mxu0
    %590 = vst [vmem:[#allocation10] sm:$0xff] %v586
    %591 = vst [vmem:[#allocation10 + $0x8] sm:$0xff] %v588
    // Predicated region
    $region38: #{tpu_custom_call.1} parent=1 // pred_check
      _
    $region39: #{tpu_custom_call.1} parent=1 // pred_check_branch
      %593 = sbr.rel (0) target = $region41
    $region40: #{tpu_custom_call.1} parent=1 // pred_region
      %595 = vsyncadd [#allocation4], 0
      %s596 = sshll.u32 [#allocation10], 4
      %s597 = int_to_ptr.vmem [resolvable:$true] %s596
      %s598 = sshll.u32 %s5, 4
      %s599 = int_to_ptr.hbm [resolvable:$true] %s598
      %604 = dma.vmem_to_hbm [thread:$0]  %s597, 256, %s599, [#allocation4], 128, 128, 8
    $region41: #{tpu_custom_call.1} parent=1 // pred_fallthru
      _
    // Predicated region
    $region42: #{tpu_custom_call.1} parent=1 // pred_check
      _
    $region43: #{tpu_custom_call.1} parent=1 // pred_check_branch
      %606 = sbr.rel (0) target = $region45
    $region44: #{tpu_custom_call.1} parent=1 // pred_region
      %608 = dma.done [#allocation4], 256
    $region45: #{tpu_custom_call.1} parent=1 // pred_fallthru
      _
    %609 = vsyncpa [#allocation3], 1
    %610 = vsyncpa [#allocation6], 1
    %611 = vsyncpa [#allocation9], 1
    %612 = vsyncpa [#allocation4], 1

</llo_original>
